<compile_context>
chip_gen: v5e
topology: v5e:2x2
jax: 0.10.0
libtpu: 0.0.40
codegen_flags: <defaults>
</compile_context>

<pallas_src>
import jax
import jax.numpy as jnp
from jax.experimental import pallas as pl
from jax.experimental.pallas import tpu as pltpu  # noqa: F401  (TPU backend)


def cf_kernel(packed_ref, o_ref):
    # packed_ref: (2, 3, 3) slab; row 0 = input a, row 1 = folded mask m.
    # Single VPU multiply, single store.
    o_ref[...] = packed_ref[0] * packed_ref[1]


def fold_masks(ma, mb, mc, md, me):
    # The constant-folding step: five (3,3) parameters collapse to one mask.
    # Done once outside the kernel; XLA fuses these 4 tiny multiplies.
    return ma * mb * mc * md * me


def cf_forward(a, m):
    """Pallas call: out = m * a, with both operands packed into one input."""
    shape = a.shape  # (3, 3): block == full array, so (8,128) tiling rule is satisfied
    packed = jnp.stack([a, m], axis=0)  # (2, 3, 3) — one DMA descriptor for both operands
    return pl.pallas_call(
        cf_kernel,
        out_shape=jax.ShapeDtypeStruct(shape, a.dtype),
        grid=(),
        in_specs=[pl.BlockSpec((2,) + shape, lambda: (0, 0, 0))],
        out_specs=pl.BlockSpec(shape, lambda: (0, 0)),
    )(packed)


@jax.jit
def cf_module_forward(a, ma, mb, mc, md, me):
    # Full module semantics: fold the parameters (fused by XLA into one tiny op,
    # packed together with the stack), then one Pallas elementwise multiply.
    m = fold_masks(ma, mb, mc, md, me)
    return cf_forward(a, m)


if __name__ == "__main__":
    key = jax.random.PRNGKey(0)
    k_a, k_ma, k_mb, k_mc, k_md, k_me = jax.random.split(key, 6)

    # Deterministic "parameters" (torch.rand -> uniform [0, 1)) and input.
    a  = jax.random.uniform(k_a,  (3, 3), dtype=jnp.float32)
    ma = jax.random.uniform(k_ma, (3, 3), dtype=jnp.float32)
    mb = jax.random.uniform(k_mb, (3, 3), dtype=jnp.float32)
    mc = jax.random.uniform(k_mc, (3, 3), dtype=jnp.float32)
    md = jax.random.uniform(k_md, (3, 3), dtype=jnp.float32)
    me = jax.random.uniform(k_me, (3, 3), dtype=jnp.float32)

    out = jax.block_until_ready(cf_module_forward(a, ma, mb, mc, md, me))

    # Reference check: exact module multiply chain (reassociation error << 1e-6).
    ref = me * (md * (mc * (mb * (ma * a))))
    assert out.shape == (3, 3) and out.dtype == jnp.float32
    assert jnp.allclose(out, ref, rtol=1e-6, atol=1e-6)

    print("KERNEL_OK")
</pallas_src>

<mosaic_0001>
module attributes {stable_mosaic.version = 11 : i64} {
  func.func @cf_kernel(%arg0: memref<2x3x3xf32, #tpu.memory_space<vmem>>, %arg1: memref<3x3xf32, #tpu.memory_space<vmem>>) attributes {dimension_semantics = [], scalar_prefetch = 0 : i64, scratch_operands = 0 : i64, tpu.core_type = #tpu.core_type<tc>} {
    %c0 = arith.constant 0 : index
    %c0_0 = arith.constant 0 : index
    %c0_1 = arith.constant 0 : index
    %0 = vector.load %arg0[%c0, %c0_0, %c0_1] : memref<2x3x3xf32, #tpu.memory_space<vmem>>, vector<1x3x3xf32>
    %1 = vector.shape_cast %0 : vector<1x3x3xf32> to vector<3x3xf32>
    %c1 = arith.constant 1 : index
    %c0_2 = arith.constant 0 : index
    %c0_3 = arith.constant 0 : index
    %2 = vector.load %arg0[%c1, %c0_2, %c0_3] : memref<2x3x3xf32, #tpu.memory_space<vmem>>, vector<1x3x3xf32>
    %3 = vector.shape_cast %2 : vector<1x3x3xf32> to vector<3x3xf32>
    %4 = arith.mulf %1, %3 : vector<3x3xf32>
    %c0_4 = arith.constant 0 : index
    %c0_5 = arith.constant 0 : index
    %5 = vector.load %arg1[%c0_4, %c0_5] : memref<3x3xf32, #tpu.memory_space<vmem>>, vector<3x3xf32>
    tpu.vector_store %arg1[%c0_4, %c0_5], %4 {strides = array<i32>} : memref<3x3xf32, #tpu.memory_space<vmem>>, vector<3x3xf32>,
    return
  }
}

</mosaic_0001>

<llo_original>
// kernel: cf_module_forward.1
$region0: #{cf_module_forward.1}
  #allocation0 [shape = 'u32[]', space=smem, size = 0x4, offset = 0x4, fixed_abs, tag = 'smem constant byte address 0x4 - core index']
  #allocation1 [shape = 'u32[72,128]{1,0:T(1,128)}', space=vmem, size = 0x9000, scoped, tag = 'internal scratch']
  %s0 = inlined_call_operand.vmem [shape: f32[2,3,3], index: 0, kind: input, shape index: {}]
  %s1 = inlined_call_operand.hbm [shape: f32[3,3], index: 1, kind: output, shape index: {}]
  %s2 = sld [smem:[#allocation0]]
  $region14: #{cf_module_forward.1} parent=0
    _
  %s4 = ssub.s32 1, %s2
  %s5 = scalar_select 0, %s4, %s2
  $region1: #{cf_module_forward.1} parent=0
    #allocation2 [shape = 'u8[2048]{0}', space=vmem, size = 0x800, scoped, tag = 'output window, operand 0, single buffered']
    #allocation3 [shape = 's32[1]{0}', space=sflag, size = 0x4, scoped, tag = 'scoped memory for cf_module_forward.1']
    %6 = vsyncpa [#allocation3], 0
    // Predicated region
    $region2: #{cf_module_forward.1} parent=1 // pred_check
      _
    $region3: #{cf_module_forward.1} parent=1 // pred_check_branch
      %8 = sbr.rel (0) target = $region5
    $region4: #{cf_module_forward.1} parent=1 // pred_region
      _
    $region5: #{cf_module_forward.1} parent=1 // pred_fallthru
      _
    %v9 = vld [vmem:[%s0] sm:$0x7]
    %s10 = scalar_lea.vmem %s0, 4
    %v11 = vld [vmem:[%s10] sm:$0x7]
    %v12 = vmul.f32 %v9, %v11
    %vm13 = vcmask 18432
    %14 = vst.msk [vmem:[#allocation2] sm:$0x7] %vm13, %v12
    // Predicated region
    $region6: #{cf_module_forward.1} parent=1 // pred_check
      _
    $region7: #{cf_module_forward.1} parent=1 // pred_check_branch
      %16 = sbr.rel (0) target = $region9
    $region8: #{cf_module_forward.1} parent=1 // pred_region
      %18 = vsyncadd [#allocation3], 0
      %s20 = sshll.u32 [#allocation2], 4
      %s21 = int_to_ptr.vmem [resolvable:$true] %s20
      %s22 = sshll.u32 %s1, 4
      %s23 = int_to_ptr.hbm [resolvable:$true] %s22
      %25 = dma.vmem_to_hbm [thread:$0]  %s21, 64, %s23, [#allocation3]
    $region9: #{cf_module_forward.1} parent=1 // pred_fallthru
      _
    // Predicated region
    $region10: #{cf_module_forward.1} parent=1 // pred_check
      _
    $region11: #{cf_module_forward.1} parent=1 // pred_check_branch
      %27 = sbr.rel (0) target = $region13
    $region12: #{cf_module_forward.1} parent=1 // pred_region
      %29 = dma.done [#allocation3], 64
    $region13: #{cf_module_forward.1} parent=1 // pred_fallthru
      _
    %30 = vsyncpa [#allocation3], 1

</llo_original>
